<compile_context>
chip_gen: v5e
topology: v5e:2x2
jax: 0.10.0
libtpu: 0.0.40
codegen_flags: <defaults>
</compile_context>

<pallas_src>
import functools

import jax
import jax.numpy as jnp
from jax.experimental import pallas as pl
from jax.experimental.pallas import tpu as pltpu


def _round_up(x, m):
    return (x + m - 1) // m * m


def _make_kernel(tile_n, f, n_valid, with_probs):
    """3x (linear1 + ReLU) + masked per-tile cross-entropy sum (+ softmax in eval)."""

    def kernel(x_ref, labels_ref, w1_ref, b1_ref, *out_refs):
        if with_probs:
            probs_ref, loss_ref = out_refs
        else:
            (loss_ref,) = out_refs

        w1 = w1_ref[...]                              # (f, f) bf16, (in, out) layout
        b1 = b1_ref[...]                              # (1, f) f32
        h = x_ref[...]                                # (tile_n, f) f32

        # linear1 reused 3x, exactly as in the PyTorch forward.
        # bf16 MXU operands, f32 accumulation; bias added via implicit
        # (1,f) -> (tile_n,f) sublane broadcast (not materialized).
        for _ in range(3):
            acc = jnp.dot(h.astype(jnp.bfloat16), w1,
                          preferred_element_type=jnp.float32)
            h = jnp.maximum(acc + b1, 0.0)
        logits = h                                    # (tile_n, f) f32

        # Numerically-stable log-sum-exp.
        m = jnp.max(logits, axis=-1, keepdims=True)   # (tile_n, 1)
        e = jnp.exp(logits - m)                       # (tile_n, f)
        s = jnp.sum(e, axis=-1, keepdims=True)        # (tile_n, 1)
        lse = m + jnp.log(s)                          # (tile_n, 1)

        # Picked logit via a select (no int->f32 cast, no extra vmul).
        labels = labels_ref[...]                      # (tile_n, 1) int32
        col = jax.lax.broadcasted_iota(jnp.int32, (tile_n, f), 1)
        picked = jnp.sum(jnp.where(col == labels, logits, 0.0),
                         axis=-1, keepdims=True)      # (tile_n, 1)

        # In-kernel masked reduction: padded rows (global index >= n_valid)
        # contribute 0.  n_valid is a static Python int (batch size is known
        # at trace time), so no scalar prefetch is needed.
        row = (jax.lax.broadcasted_iota(jnp.int32, (tile_n, 1), 0)
               + pl.program_id(0) * tile_n)
        per_ex = jnp.where(row < n_valid, lse - picked, 0.0)
        loss_ref[...] = jnp.sum(per_ex, axis=0, keepdims=True)   # (1, 1) tile sum

        if with_probs:
            # EUP approximate reciprocal (separate issue slot); probs stored
            # in bf16 to halve the only large HBM writeback in eval mode.
            probs = e * pl.reciprocal(s, approx=True)
            probs_ref[...] = probs.astype(probs_ref.dtype)

    return kernel


@functools.partial(jax.jit, static_argnames=("train_mode", "tile_n"))
def model_forward(x, labels, w1_bf16, b1_row, *, train_mode=True, tile_n=1024):
    """Forward pass of Model.

    x:        (N, 128) f32
    labels:   (N,) int class indices
    w1_bf16:  (128, 128) bf16, ALREADY transposed to (in, out) layout
    b1_row:   (1, 128) f32
    """
    n, f = x.shape
    assert f == 128 and w1_bf16.shape == (f, f), (
        "original forward (linear1 reused 3x) requires 128 input features")
    assert b1_row.shape == (1, f)

    # Batch tiling: big tiles amortize per-step overhead and MXU fill/drain;
    # tiny batches collapse to a single grid step.
    tile_n = _round_up(tile_n, 8)
    tile = min(tile_n, _round_up(n, 8))
    num_tiles = pl.cdiv(n, tile)
    # v7x megacore: the grid axis is "parallel"; prefer an even tile count so
    # the two TensorCores get balanced work (no effect on v5e/v6e: 1 TC).
    if num_tiles > 1 and num_tiles % 2 == 1 and tile % 16 == 0:
        alt_tile = tile // 2
        alt_tiles = pl.cdiv(n, alt_tile)
        if alt_tiles % 2 == 0:
            tile, num_tiles = alt_tile, alt_tiles
    n_pad = num_tiles * tile

    labels2d = labels.astype(jnp.int32).reshape(n, 1)
    if n_pad != n:
        x_in = jnp.pad(x, ((0, n_pad - n), (0, 0)))
        labels_in = jnp.pad(labels2d, ((0, n_pad - n), (0, 0)))
    else:
        x_in, labels_in = x, labels2d

    in_specs = [
        pl.BlockSpec((tile, f), lambda i: (i, 0)),   # x: batch-tiled, pipelined
        pl.BlockSpec((tile, 1), lambda i: (i, 0)),   # labels: batch-tiled (4 B/row)
        pl.BlockSpec((f, f), lambda i: (0, 0)),      # W1 (bf16): VMEM-resident
        pl.BlockSpec((1, f), lambda i: (0, 0)),      # b1: VMEM-resident
    ]
    # In-kernel-reduced loss: one f32 per tile (no per-example HBM slab, no
    # per-row lane-width-1 masked stores).
    loss_spec = pl.BlockSpec((1, 1), lambda i: (i, 0))
    loss_shape = jax.ShapeDtypeStruct((num_tiles, 1), jnp.float32)

    compiler_params = pltpu.CompilerParams(
        dimension_semantics=("parallel",),           # independent batch tiles
    )
    kernel_args = (x_in, labels_in, w1_bf16, b1_row)

    if train_mode:
        # Loss-only kernel: no softmax probs computed or written.
        tile_sums = pl.pallas_call(
            _make_kernel(tile, f, n, with_probs=False),
            out_shape=loss_shape,
            grid_spec=pltpu.PrefetchScalarGridSpec(
                num_scalar_prefetch=0,
                grid=(num_tiles,),
                in_specs=in_specs,
                out_specs=loss_spec,
            ),
            compiler_params=compiler_params,
        )(*kernel_args)
        return jnp.sum(tile_sums) / n

    probs, tile_sums = pl.pallas_call(
        _make_kernel(tile, f, n, with_probs=True),
        out_shape=(
            jax.ShapeDtypeStruct((n_pad, f), jnp.bfloat16),   # softmax probs
            loss_shape,                                       # per-tile CE sums
        ),
        grid_spec=pltpu.PrefetchScalarGridSpec(
            num_scalar_prefetch=0,
            grid=(num_tiles,),
            in_specs=in_specs,
            out_specs=(
                pl.BlockSpec((tile, f), lambda i: (i, 0)),
                loss_spec,
            ),
        ),
        compiler_params=compiler_params,
    )(*kernel_args)
    return probs[:n], jnp.sum(tile_sums) / n


def init_params(key, in_features, out_features):
    """Deterministic, PyTorch-shaped params (linear2/linear3 unused in forward)."""
    k1, k2, k3, k4, k5, k6 = jax.random.split(key, 6)
    bound1 = 1.0 / jnp.sqrt(in_features)
    w1 = jax.random.uniform(k1, (128, in_features), jnp.float32, -bound1, bound1)
    b1 = jax.random.uniform(k2, (128,), jnp.float32, -bound1, bound1)
    bound2 = 1.0 / jnp.sqrt(128.0)
    w2 = jax.random.uniform(k3, (64, 128), jnp.float32, -bound2, bound2)
    b2 = jax.random.uniform(k4, (64,), jnp.float32, -bound2, bound2)
    bound3 = 1.0 / jnp.sqrt(64.0)
    w3 = jax.random.uniform(k5, (out_features, 64), jnp.float32, -bound3, bound3)
    b3 = jax.random.uniform(k6, (out_features,), jnp.float32, -bound3, bound3)
    return dict(w1=w1, b1=b1, w2=w2, b2=b2, w3=w3, b3=b3)


def prepare_params(params):
    """One-time layout/dtype prep (hoisted out of the per-call path):
    W1 -> (in, out) bf16 MXU operand, bias -> (1, 128) f32 row."""
    w1_bf16 = jnp.asarray(params["w1"]).T.astype(jnp.bfloat16)
    b1_row = jnp.asarray(params["b1"]).reshape(1, -1).astype(jnp.float32)
    return jax.block_until_ready(w1_bf16), jax.block_until_ready(b1_row)


def ref_forward_f32(x, labels, w1, b1):
    """Pure-f32 PyTorch-equivalent reference."""
    h = x
    for _ in range(3):
        h = jax.nn.relu(h @ w1.T + b1)
    logp = jax.nn.log_softmax(h, axis=1)
    loss = -jnp.mean(jnp.take_along_axis(logp, labels[:, None], axis=1))
    return jax.nn.softmax(h, axis=1), loss


def ref_forward_bf16(x, labels, w1_bf16_t, b1_row):
    """Reference matched to the kernel's bf16-operand / f32-accum matmul."""
    h = x
    for _ in range(3):
        acc = jnp.dot(h.astype(jnp.bfloat16), w1_bf16_t,
                      preferred_element_type=jnp.float32)
        h = jax.nn.relu(acc + b1_row)
    logp = jax.nn.log_softmax(h, axis=1)
    loss = -jnp.mean(jnp.take_along_axis(logp, labels[:, None], axis=1))
    return jax.nn.softmax(h, axis=1), loss


if __name__ == "__main__":
    key = jax.random.PRNGKey(0)
    kx, kl, kp, kx2, kl2 = jax.random.split(key, 5)

    # in_features MUST be 128 for the original forward (linear1 reused 3x).
    in_features = 128
    out_features = 3          # wine dataset has 3 classes (linear2/linear3 unused)
    batch = 40                # tiny batch -> single grid step (tile = 48)

    params = init_params(kp, in_features, out_features)
    w1_bf16, b1_row = prepare_params(params)

    x = jax.random.normal(kx, (batch, in_features), jnp.float32)
    labels = jax.random.randint(kl, (batch,), 0, out_features, jnp.int32)

    # Train mode: scalar loss only (no probs output computed).
    loss = model_forward(x, labels, w1_bf16, b1_row, train_mode=True)
    loss = jax.block_until_ready(loss)

    # Eval mode: (softmax probs in bf16, loss).
    probs, loss2 = model_forward(x, labels, w1_bf16, b1_row, train_mode=False)
    probs = jax.block_until_ready(probs)
    loss2 = jax.block_until_ready(loss2)

    probs_bf_ref, loss_bf_ref = ref_forward_bf16(x, labels, w1_bf16, b1_row)
    probs_f32_ref, loss_f32_ref = ref_forward_f32(x, labels, params["w1"], params["b1"])

    # Tight check vs. the bf16-matched reference (same matmul precision).
    assert jnp.allclose(loss, loss_bf_ref, atol=1e-4, rtol=1e-4)
    assert jnp.allclose(loss2, loss_bf_ref, atol=1e-4, rtol=1e-4)
    assert jnp.allclose(loss, loss2, atol=1e-5, rtol=1e-5)
    assert jnp.allclose(probs.astype(jnp.float32), probs_bf_ref, atol=2e-3, rtol=2e-2)
    # Loose check vs. the full-f32 reference (documents the bf16-MXU tradeoff
    # requested by the perf review; probs are additionally bf16 on output).
    assert jnp.allclose(loss, loss_f32_ref, atol=5e-3, rtol=5e-3)
    assert jnp.allclose(probs.astype(jnp.float32), probs_f32_ref, atol=1e-2, rtol=5e-2)

    # Larger batch: exercises the multi-tile grid (even tile count for v7x),
    # batch padding, and the in-kernel masked loss reduction.
    batch2 = 200
    x2 = jax.random.normal(kx2, (batch2, in_features), jnp.float32)
    labels2 = jax.random.randint(kl2, (batch2,), 0, out_features, jnp.int32)
    loss_m = model_forward(x2, labels2, w1_bf16, b1_row, train_mode=True, tile_n=64)
    loss_m = jax.block_until_ready(loss_m)
    _, loss_m_ref = ref_forward_bf16(x2, labels2, w1_bf16, b1_row)
    assert jnp.allclose(loss_m, loss_m_ref, atol=1e-4, rtol=1e-4)

    print("KERNEL_OK")
</pallas_src>

<mosaic_0001>
module attributes {stable_mosaic.version = 11 : i64} {
  func.func @kernel(%arg0: i32, %arg1: memref<40x128xf32, #tpu.memory_space<vmem>>, %arg2: memref<40x1xi32, #tpu.memory_space<vmem>>, %arg3: memref<128x128xbf16, #tpu.memory_space<vmem>>, %arg4: memref<1x128xf32, #tpu.memory_space<vmem>>, %arg5: memref<1x1xf32, #tpu.memory_space<vmem>>) attributes {dimension_semantics = [#tpu.dimension_semantics<parallel>], iteration_bounds = array<i64: 1>, scalar_prefetch = 0 : i64, scratch_operands = 0 : i64, tpu.core_type = #tpu.core_type<tc>, window_params = [{transform_indices = @transform_0, window_bounds = array<i64: 40, 128>}, {transform_indices = @transform_1, window_bounds = array<i64: 40, 1>}, {pipeline_mode = #tpu.pipeline_mode<synchronous>, transform_indices = @transform_2, window_bounds = array<i64: 128, 128>}, {pipeline_mode = #tpu.pipeline_mode<synchronous>, transform_indices = @transform_3, window_bounds = array<i64: 1, 128>}, {transform_indices = @transform_4, window_bounds = array<i64: 1, 1>}]} {
    %c0 = arith.constant 0 : index
    %c0_0 = arith.constant 0 : index
    %0 = vector.load %arg3[%c0, %c0_0] : memref<128x128xbf16, #tpu.memory_space<vmem>>, vector<128x128xbf16>
    %c0_1 = arith.constant 0 : index
    %c0_2 = arith.constant 0 : index
    %1 = vector.load %arg4[%c0_1, %c0_2] : memref<1x128xf32, #tpu.memory_space<vmem>>, vector<1x128xf32>
    %c0_3 = arith.constant 0 : index
    %c0_4 = arith.constant 0 : index
    %2 = vector.load %arg1[%c0_3, %c0_4] : memref<40x128xf32, #tpu.memory_space<vmem>>, vector<40x128xf32>
    %3 = arith.truncf %2 : vector<40x128xf32> to vector<40x128xbf16>
    %cst = arith.constant dense<0.000000e+00> : vector<40x128xf32>
    %4 = tpu.matmul %3, %0, %cst {dimension_numbers = #tpu.dot_dimension_numbers<[1], [0], [0], [1], [0, 0, 1, 1], [], []>} : vector<40x128xbf16>, vector<128x128xbf16>, vector<40x128xf32> -> vector<40x128xf32>
    %5 = vector.broadcast %1 : vector<1x128xf32> to vector<40x128xf32>
    %6 = arith.addf %4, %5 : vector<40x128xf32>
    %cst_5 = arith.constant 0.000000e+00 : f32
    %7 = vector.broadcast %cst_5 : f32 to vector<40x128xf32>
    %8 = arith.maximumf %6, %7 : vector<40x128xf32>
    %9 = arith.truncf %8 : vector<40x128xf32> to vector<40x128xbf16>
    %cst_6 = arith.constant dense<0.000000e+00> : vector<40x128xf32>
    %10 = tpu.matmul %9, %0, %cst_6 {dimension_numbers = #tpu.dot_dimension_numbers<[1], [0], [0], [1], [0, 0, 1, 1], [], []>} : vector<40x128xbf16>, vector<128x128xbf16>, vector<40x128xf32> -> vector<40x128xf32>
    %11 = vector.broadcast %1 : vector<1x128xf32> to vector<40x128xf32>
    %12 = arith.addf %10, %11 : vector<40x128xf32>
    %cst_7 = arith.constant 0.000000e+00 : f32
    %13 = vector.broadcast %cst_7 : f32 to vector<40x128xf32>
    %14 = arith.maximumf %12, %13 : vector<40x128xf32>
    %15 = arith.truncf %14 : vector<40x128xf32> to vector<40x128xbf16>
    %cst_8 = arith.constant dense<0.000000e+00> : vector<40x128xf32>
    %16 = tpu.matmul %15, %0, %cst_8 {dimension_numbers = #tpu.dot_dimension_numbers<[1], [0], [0], [1], [0, 0, 1, 1], [], []>} : vector<40x128xbf16>, vector<128x128xbf16>, vector<40x128xf32> -> vector<40x128xf32>
    %17 = vector.broadcast %1 : vector<1x128xf32> to vector<40x128xf32>
    %18 = arith.addf %16, %17 : vector<40x128xf32>
    %cst_9 = arith.constant 0.000000e+00 : f32
    %19 = vector.broadcast %cst_9 : f32 to vector<40x128xf32>
    %20 = arith.maximumf %18, %19 : vector<40x128xf32>
    %cst_10 = arith.constant dense<0xFF800000> : vector<40xf32>
    %21 = vector.multi_reduction <maximumf>, %20, %cst_10 [1] : vector<40x128xf32> to vector<40xf32>
    %22 = vector.shape_cast %21 : vector<40xf32> to vector<40x1xf32>
    %23 = vector.broadcast %22 : vector<40x1xf32> to vector<40x128xf32>
    %24 = arith.subf %20, %23 : vector<40x128xf32>
    %25 = math.exp %24 : vector<40x128xf32>
    %cst_11 = arith.constant dense<0.000000e+00> : vector<40xf32>
    %26 = vector.multi_reduction <add>, %25, %cst_11 [1] : vector<40x128xf32> to vector<40xf32>
    %27 = vector.shape_cast %26 : vector<40xf32> to vector<40x1xf32>
    %28 = math.log %27 : vector<40x1xf32>
    %29 = arith.addf %22, %28 : vector<40x1xf32>
    %c0_12 = arith.constant 0 : index
    %c0_13 = arith.constant 0 : index
    %30 = vector.load %arg2[%c0_12, %c0_13] : memref<40x1xi32, #tpu.memory_space<vmem>>, vector<40x1xi32>
    %31 = tpu.iota {dimensions = array<i32: 1>} : vector<40x128xi32>
    %32 = vector.broadcast %30 : vector<40x1xi32> to vector<40x128xi32>
    %33 = arith.cmpi eq, %31, %32 : vector<40x128xi32>
    %cst_14 = arith.constant 0.000000e+00 : f32
    %34 = vector.broadcast %cst_14 : f32 to vector<40x128xf32>
    %35 = arith.select %33, %20, %34 : vector<40x128xi1>, vector<40x128xf32>
    %cst_15 = arith.constant dense<0.000000e+00> : vector<40xf32>
    %36 = vector.multi_reduction <add>, %35, %cst_15 [1] : vector<40x128xf32> to vector<40xf32>
    %37 = vector.shape_cast %36 : vector<40xf32> to vector<40x1xf32>
    %38 = tpu.iota {dimensions = array<i32: 0>} : vector<40x1xi32>
    %c40_i32 = arith.constant 40 : i32
    %39 = arith.muli %arg0, %c40_i32 : i32
    %40 = vector.broadcast %39 : i32 to vector<40x1xi32>
    %41 = arith.addi %38, %40 : vector<40x1xi32>
    %c40_i32_16 = arith.constant 40 : i32
    %42 = vector.broadcast %c40_i32_16 : i32 to vector<40x1xi32>
    %43 = arith.cmpi slt, %41, %42 : vector<40x1xi32>
    %44 = arith.subf %29, %37 : vector<40x1xf32>
    %cst_17 = arith.constant 0.000000e+00 : f32
    %45 = vector.broadcast %cst_17 : f32 to vector<40x1xf32>
    %46 = arith.select %43, %44, %45 : vector<40x1xi1>, vector<40x1xf32>
    %cst_18 = arith.constant dense<0.000000e+00> : vector<1xf32>
    %47 = vector.multi_reduction <add>, %46, %cst_18 [0] : vector<40x1xf32> to vector<1xf32>
    %48 = vector.shape_cast %47 : vector<1xf32> to vector<1x1xf32>
    %c0_19 = arith.constant 0 : index
    %c0_20 = arith.constant 0 : index
    %49 = vector.load %arg5[%c0_19, %c0_20] : memref<1x1xf32, #tpu.memory_space<vmem>>, vector<1x1xf32>
    tpu.vector_store %arg5[%c0_19, %c0_20], %48 {strides = array<i32>} : memref<1x1xf32, #tpu.memory_space<vmem>>, vector<1x1xf32>,
    return
  }
  func.func @transform_0(%arg0: i32) -> (i32, i32) {
    %c0_i32 = arith.constant 0 : i32
    %c0_i32_0 = arith.constant 0 : i32
    return %arg0, %c0_i32 : i32, i32
  }
  func.func @transform_1(%arg0: i32) -> (i32, i32) {
    %c0_i32 = arith.constant 0 : i32
    %c0_i32_0 = arith.constant 0 : i32
    return %arg0, %c0_i32 : i32, i32
  }
  func.func @transform_2(%arg0: i32) -> (i32, i32) {
    %c0_i32 = arith.constant 0 : i32
    %c0_i32_0 = arith.constant 0 : i32
    %c0_i32_1 = arith.constant 0 : i32
    return %c0_i32, %c0_i32_0 : i32, i32
  }
  func.func @transform_3(%arg0: i32) -> (i32, i32) {
    %c0_i32 = arith.constant 0 : i32
    %c0_i32_0 = arith.constant 0 : i32
    %c0_i32_1 = arith.constant 0 : i32
    return %c0_i32, %c0_i32_0 : i32, i32
  }
  func.func @transform_4(%arg0: i32) -> (i32, i32) {
    %c0_i32 = arith.constant 0 : i32
    %c0_i32_0 = arith.constant 0 : i32
    return %arg0, %c0_i32 : i32, i32
  }
}

</mosaic_0001>

<llo_original>
// kernel: model_forward.1
$region0: #{model_forward.1}
  #allocation0 [shape = 'u32[]', space=smem, size = 0x4, offset = 0x4, fixed_abs, tag = 'smem constant byte address 0x4 - core index']
  #allocation1 [shape = 'u32[72,128]{1,0:T(1,128)}', space=vmem, size = 0x9000, scoped, tag = 'internal scratch']
  %s0 = inlined_call_operand.vmem [shape: f32[40,128], index: 0, kind: input, shape index: {}]
  %s1 = inlined_call_operand.vmem [shape: s32[40,1], index: 1, kind: input, shape index: {}]
  %s2 = inlined_call_operand.hbm [shape: bf16[128,128], index: 2, kind: input, shape index: {}]
  %s3 = inlined_call_operand.vmem [shape: f32[1,128], index: 3, kind: input, shape index: {}]
  %s4 = inlined_call_operand.hbm [shape: f32[1,1], index: 4, kind: output, shape index: {}]
  %s5 = sld [smem:[#allocation0]]
  $region30: #{model_forward.1} parent=0
    _
  %s7 = ssub.s32 1, %s5
  %s8 = scalar_select 0, %s7, %s5
  $region1: #{model_forward.1} parent=0
    #allocation2 [shape = 'u8[32768]{0}', space=vmem, size = 0x8000, scoped, tag = 'input window, operand 2, single buffered']
    #allocation3 [shape = 's32[1]{0}', space=sflag, size = 0x4, scoped, tag = 'scoped memory for model_forward.1']
    #allocation4 [shape = 's32[1]{0}', space=sflag, size = 0x4, scoped, tag = 'scoped memory for model_forward.1']
    #allocation5 [shape = 'u8[512]{0}', space=vmem, size = 0x400, scoped, tag = 'output window, operand 0, single buffered']
    %9 = vsyncpa [#allocation3], 0
    %10 = vsyncpa [#allocation4], 0
    // Predicated region
    $region2: #{model_forward.1} parent=1 // pred_check
      _
    $region3: #{model_forward.1} parent=1 // pred_check_branch
      %12 = sbr.rel (0) target = $region5
    $region4: #{model_forward.1} parent=1 // pred_region
      _
    $region5: #{model_forward.1} parent=1 // pred_fallthru
      _
    // Predicated region
    $region6: #{model_forward.1} parent=1 // pred_check
      _
    $region7: #{model_forward.1} parent=1 // pred_check_branch
      %14 = sbr.rel (0) target = $region9
    $region8: #{model_forward.1} parent=1 // pred_region
      _
    $region9: #{model_forward.1} parent=1 // pred_fallthru
      _
    // Predicated region
    $region10: #{model_forward.1} parent=1 // pred_check
      _
    $region11: #{model_forward.1} parent=1 // pred_check_branch
      %16 = sbr.rel (0) target = $region13
    $region12: #{model_forward.1} parent=1 // pred_region
      %18 = vsyncadd [#allocation3], 0
      %s19 = sshll.u32 %s2, 4
      %s20 = int_to_ptr.hbm [resolvable:$true] %s19
      %s21 = sshll.u32 [#allocation2], 4
      %s22 = int_to_ptr.vmem [resolvable:$true] %s21
      %27 = dma.hbm_to_vmem [thread:$0]  %s20, 1024, %s22, [#allocation3], 64, 64, 4
    $region13: #{model_forward.1} parent=1 // pred_fallthru
      _
    // Predicated region
    $region14: #{model_forward.1} parent=1 // pred_check
      _
    $region15: #{model_forward.1} parent=1 // pred_check_branch
      %29 = sbr.rel (0) target = $region17
    $region16: #{model_forward.1} parent=1 // pred_region
      _
    $region17: #{model_forward.1} parent=1 // pred_fallthru
      _
    // Predicated region
    $region18: #{model_forward.1} parent=1 // pred_check
      _
    $region19: #{model_forward.1} parent=1 // pred_check_branch
      %31 = sbr.rel (0) target = $region21
    $region20: #{model_forward.1} parent=1 // pred_region
      %33 = dma.done [#allocation3], 1024
    $region21: #{model_forward.1} parent=1 // pred_fallthru
      _
    %v34 = vld [vmem:[#allocation2] sm:$0xf]
    %v35 = vld [vmem:[#allocation2 + $0x4] sm:$0xf]
    %v36 = vld [vmem:[#allocation2 + $0x8] sm:$0xf]
    %v37 = vld [vmem:[#allocation2 + $0xc] sm:$0xf]
    %v38 = vld [vmem:[#allocation2 + $0x10] sm:$0xf]
    %v39 = vld [vmem:[#allocation2 + $0x14] sm:$0xf]
    %v40 = vld [vmem:[#allocation2 + $0x18] sm:$0xf]
    %v41 = vld [vmem:[#allocation2 + $0x1c] sm:$0xf]
    %v42 = vld [vmem:[#allocation2 + $0x20] sm:$0xf]
    %v43 = vld [vmem:[#allocation2 + $0x24] sm:$0xf]
    %v44 = vld [vmem:[#allocation2 + $0x28] sm:$0xf]
    %v45 = vld [vmem:[#allocation2 + $0x2c] sm:$0xf]
    %v46 = vld [vmem:[#allocation2 + $0x30] sm:$0xf]
    %v47 = vld [vmem:[#allocation2 + $0x34] sm:$0xf]
    %v48 = vld [vmem:[#allocation2 + $0x38] sm:$0xf]
    %v49 = vld [vmem:[#allocation2 + $0x3c] sm:$0xf]
    %v50 = vld [vmem:[%s3] sm:$0x1]
    %v51 = vld [vmem:[%s0] sm:$0xff]
    %v52 = vld [vmem:[%s0 + $0x8] sm:$0xff]
    %v53 = vld [vmem:[%s0 + $0x10] sm:$0xff]
    %v54 = vld [vmem:[%s0 + $0x18] sm:$0xff]
    %v55 = vld [vmem:[%s0 + $0x20] sm:$0xff]
    %v56 = vpack.c.bf16 %v52, %v51
    %v57 = vpack.c.bf16 %v54, %v53
    %v58 = vpack.c.bf16 %v55, %v55
    %v60 = vperm.slane %v50, 0
    %v78 = vunpack.c.l.b16 %v34
    %v79 = vunpack.c.l.b16 %v35
    %v80 = vunpack.c.l.b16 %v36
    %v81 = vunpack.c.l.b16 %v37
    %v82 = vunpack.c.l.b16 %v38
    %v83 = vunpack.c.l.b16 %v39
    %v84 = vunpack.c.l.b16 %v40
    %v85 = vunpack.c.l.b16 %v41
    %v86 = vunpack.c.l.b16 %v42
    %v87 = vunpack.c.l.b16 %v43
    %v88 = vunpack.c.l.b16 %v44
    %v89 = vunpack.c.l.b16 %v45
    %v90 = vunpack.c.l.b16 %v46
    %v91 = vunpack.c.l.b16 %v47
    %v92 = vunpack.c.l.b16 %v48
    %v93 = vunpack.c.l.b16 %v49
    %v94 = vpack.c.b16 %v79, %v78
    %v95 = vpack.c.b16 %v81, %v80
    %v96 = vpack.c.b16 %v83, %v82
    %v97 = vpack.c.b16 %v85, %v84
    %v98 = vpack.c.b16 %v87, %v86
    %v99 = vpack.c.b16 %v89, %v88
    %v100 = vpack.c.b16 %v91, %v90
    %v101 = vpack.c.b16 %v93, %v92
    %110 = vmatpush.bf16.msra.mxu0 %v101
    %111 = vmatpush.bf16.msra.mxu0 %v100
    %112 = vmatpush.bf16.msra.mxu0 %v99
    %113 = vmatpush.bf16.msra.mxu0 %v98
    %114 = vmatpush.bf16.msra.mxu0 %v97
    %115 = vmatpush.bf16.msra.mxu0 %v96
    %116 = vmatpush.bf16.msra.mxu0 %v95
    %117 = vmatpush.bf16.msra.mxu0 %v94
    %118 = vmatmul.bf16.gmra.mxu0 %v56
    %v119 = vpop.f32.mrf.mxu0
    %v120 = vadd.f32 %v60, %v119
    %v121 = vpop.f32.mrf.mxu0
    %v122 = vadd.f32 %v60, %v121
    %123 = vmatmul.bf16.gmra.mxu0 %v57
    %v124 = vpop.f32.mrf.mxu0
    %v125 = vadd.f32 %v60, %v124
    %v126 = vpop.f32.mrf.mxu0
    %v127 = vadd.f32 %v60, %v126
    %128 = vmatmul.bf16.gmra.mxu0 %v58
    %v129 = vpop.f32.mrf.mxu0
    %v130 = vadd.f32 %v60, %v129
    %v131 = vpop.f32.mrf.mxu0
    %132 = vdwg.mxu0
    %v133 = vmax.f32 %v120, 0.0
    %v134 = vmax.f32 %v122, 0.0
    %v135 = vmax.f32 %v125, 0.0
    %v136 = vmax.f32 %v127, 0.0
    %v137 = vmax.f32 %v130, 0.0
    %v138 = vpack.c.bf16 %v134, %v133
    %v139 = vpack.c.bf16 %v136, %v135
    %v140 = vpack.c.bf16 %v137, %v137
    %141 = vmatpush.bf16.msra.mxu0 %v101
    %142 = vmatpush.bf16.msra.mxu0 %v100
    %143 = vmatpush.bf16.msra.mxu0 %v99
    %144 = vmatpush.bf16.msra.mxu0 %v98
    %145 = vmatpush.bf16.msra.mxu0 %v97
    %146 = vmatpush.bf16.msra.mxu0 %v96
    %147 = vmatpush.bf16.msra.mxu0 %v95
    %148 = vmatpush.bf16.msra.mxu0 %v94
    %149 = vmatmul.bf16.gmra.mxu0 %v138
    %v150 = vpop.f32.mrf.mxu0
    %v151 = vadd.f32 %v60, %v150
    %v152 = vpop.f32.mrf.mxu0
    %v153 = vadd.f32 %v60, %v152
    %154 = vmatmul.bf16.gmra.mxu0 %v139
    %v155 = vpop.f32.mrf.mxu0
    %v156 = vadd.f32 %v60, %v155
    %v157 = vpop.f32.mrf.mxu0
    %v158 = vadd.f32 %v60, %v157
    %159 = vmatmul.bf16.gmra.mxu0 %v140
    %v160 = vpop.f32.mrf.mxu0
    %v161 = vadd.f32 %v60, %v160
    %v162 = vpop.f32.mrf.mxu0
    %163 = vdwg.mxu0
    %v164 = vmax.f32 %v151, 0.0
    %v165 = vmax.f32 %v153, 0.0
    %v166 = vmax.f32 %v156, 0.0
    %v167 = vmax.f32 %v158, 0.0
    %v168 = vmax.f32 %v161, 0.0
    %v169 = vpack.c.bf16 %v165, %v164
    %v170 = vpack.c.bf16 %v167, %v166
    %v171 = vpack.c.bf16 %v168, %v168
    %172 = vmatpush.bf16.msra.mxu0 %v101
    %173 = vmatpush.bf16.msra.mxu0 %v100
    %174 = vmatpush.bf16.msra.mxu0 %v99
    %175 = vmatpush.bf16.msra.mxu0 %v98
    %176 = vmatpush.bf16.msra.mxu0 %v97
    %177 = vmatpush.bf16.msra.mxu0 %v96
    %178 = vmatpush.bf16.msra.mxu0 %v95
    %179 = vmatpush.bf16.msra.mxu0 %v94
    %180 = vmatmul.bf16.gmra.mxu0 %v169
    %v181 = vpop.f32.mrf.mxu0
    %v182 = vadd.f32 %v60, %v181
    %v183 = vpop.f32.mrf.mxu0
    %v184 = vadd.f32 %v60, %v183
    %185 = vmatmul.bf16.gmra.mxu0 %v170
    %v186 = vpop.f32.mrf.mxu0
    %v187 = vadd.f32 %v60, %v186
    %v188 = vpop.f32.mrf.mxu0
    %v189 = vadd.f32 %v60, %v188
    %190 = vmatmul.bf16.gmra.mxu0 %v171
    %v191 = vpop.f32.mrf.mxu0
    %v192 = vadd.f32 %v60, %v191
    %v193 = vpop.f32.mrf.mxu0
    %194 = vdwg.mxu0
    %v195 = vmax.f32 %v182, 0.0
    %v196 = vmax.f32 %v184, 0.0
    %v197 = vmax.f32 %v187, 0.0
    %v198 = vmax.f32 %v189, 0.0
    %v199 = vmax.f32 %v192, 0.0
    %200 = vmax.xlane.f32.xlu0 %v195
    %v201 = vpop.xlane.xlu0 %200
    %202 = vmax.xlane.f32.xlu0 %v196
    %v203 = vpop.xlane.xlu0 %202
    %204 = vmax.xlane.f32.xlu0 %v197
    %v205 = vpop.xlane.xlu0 %204
    %206 = vmax.xlane.f32.xlu0 %v198
    %v207 = vpop.xlane.xlu0 %206
    %208 = vmax.xlane.f32.xlu0 %v199
    %v209 = vpop.xlane.xlu0 %208
    %v210 = vsub.f32 %v195, %v201
    %v211 = vsub.f32 %v196, %v203
    %v212 = vsub.f32 %v197, %v205
    %v213 = vsub.f32 %v198, %v207
    %v214 = vsub.f32 %v199, %v209
    %v215 = vmul.f32 %v210, 1.442695
    %v216 = vpow.pop %v215
    %v217 = vmul.f32 %v211, 1.442695
    %v218 = vpow.pop %v217
    %v219 = vmul.f32 %v212, 1.442695
    %v220 = vpow.pop %v219
    %v221 = vmul.f32 %v213, 1.442695
    %v222 = vpow.pop %v221
    %v223 = vmul.f32 %v214, 1.442695
    %v224 = vpow.pop %v223
    %225 = vadd.xlane.f32.xlu0 %v216
    %v226 = vpop.xlane.xlu0 %225
    %227 = vadd.xlane.f32.xlu0 %v218
    %v228 = vpop.xlane.xlu0 %227
    %229 = vadd.xlane.f32.xlu0 %v220
    %v230 = vpop.xlane.xlu0 %229
    %231 = vadd.xlane.f32.xlu0 %v222
    %v232 = vpop.xlane.xlu0 %231
    %233 = vadd.xlane.f32.xlu0 %v224
    %v234 = vpop.xlane.xlu0 %233
    %v235 = vlog2.pop %v226
    %v236 = vmul.f32 %v235, 0.6931472
    %v237 = vlog2.pop %v228
    %v238 = vmul.f32 %v237, 0.6931472
    %v239 = vlog2.pop %v230
    %v240 = vmul.f32 %v239, 0.6931472
    %v241 = vlog2.pop %v232
    %v242 = vmul.f32 %v241, 0.6931472
    %v243 = vlog2.pop %v234
    %v244 = vmul.f32 %v243, 0.6931472
    %v245 = vadd.f32 %v201, %v236
    %v246 = vadd.f32 %v203, %v238
    %v247 = vadd.f32 %v205, %v240
    %v248 = vadd.f32 %v207, %v242
    %v249 = vadd.f32 %v209, %v244
    %v250 = vld [vmem:[%s1] sm:$0xff]
    %v251 = vld [vmem:[%s1 + $0x8] sm:$0xff]
    %v252 = vld [vmem:[%s1 + $0x10] sm:$0xff]
    %v253 = vld [vmem:[%s1 + $0x18] sm:$0xff]
    %v254 = vld [vmem:[%s1 + $0x20] sm:$0xff]
    %v255 = vlaneseq
    %v256 = vand.u32 %v255, 127
    %257 = vset.pattern.permute.xlu0 0
    %258 = vperm.xlu0 %257, %v250
    %v259 = vpop.permute.xlu0 %258
    %260 = vset.pattern.permute.xlu0 0
    %261 = vperm.xlu0 %260, %v251
    %v262 = vpop.permute.xlu0 %261
    %263 = vset.pattern.permute.xlu0 0
    %264 = vperm.xlu0 %263, %v252
    %v265 = vpop.permute.xlu0 %264
    %266 = vset.pattern.permute.xlu0 0
    %267 = vperm.xlu0 %266, %v253
    %v268 = vpop.permute.xlu0 %267
    %269 = vset.pattern.permute.xlu0 0
    %270 = vperm.xlu0 %269, %v254
    %v271 = vpop.permute.xlu0 %270
    %vm272 = vcmp.eq.s32.totalorder %v256, %v259
    %vm273 = vcmp.eq.s32.totalorder %v256, %v262
    %vm274 = vcmp.eq.s32.totalorder %v256, %v265
    %vm275 = vcmp.eq.s32.totalorder %v256, %v268
    %vm276 = vcmp.eq.s32.totalorder %v256, %v271
    %v277 = vsel %vm272, %v195, 0.0
    %v278 = vsel %vm273, %v196, 0.0
    %v279 = vsel %vm274, %v197, 0.0
    %v280 = vsel %vm275, %v198, 0.0
    %v281 = vsel %vm276, %v199, 0.0
    %282 = vadd.xlane.f32.xlu0 %v277
    %v283 = vpop.xlane.xlu0 %282
    %284 = vadd.xlane.f32.xlu0 %v278
    %v285 = vpop.xlane.xlu0 %284
    %286 = vadd.xlane.f32.xlu0 %v279
    %v287 = vpop.xlane.xlu0 %286
    %288 = vadd.xlane.f32.xlu0 %v280
    %v289 = vpop.xlane.xlu0 %288
    %290 = vadd.xlane.f32.xlu0 %v281
    %v291 = vpop.xlane.xlu0 %290
    %v292 = vlaneseq
    %v293 = vshrl.u32 %v292, 7
    %v294 = vadd.s32 %v293, 8
    %v295 = vadd.s32 %v293, 16
    %v296 = vadd.s32 %v293, 24
    %v297 = vadd.s32 %v293, 32
    %s298 = smul.u32 0, 40
    %v299 = vstv %s298
    %v300 = vadd.s32 %v293, %v299
    %v301 = vadd.s32 %v294, %v299
    %v302 = vadd.s32 %v295, %v299
    %v303 = vadd.s32 %v296, %v299
    %v304 = vadd.s32 %v297, %v299
    %vm305 = vcmp.lt.s32.totalorder %v300, 40
    %vm306 = vcmp.lt.s32.totalorder %v301, 40
    %vm307 = vcmp.lt.s32.totalorder %v302, 40
    %vm308 = vcmp.lt.s32.totalorder %v303, 40
    %vm309 = vcmp.lt.s32.totalorder %v304, 40
    %v310 = vsub.f32 %v245, %v283
    %v311 = vsub.f32 %v246, %v285
    %v312 = vsub.f32 %v247, %v287
    %v313 = vsub.f32 %v248, %v289
    %v314 = vsub.f32 %v249, %v291
    %v315 = vsel %vm305, %v310, 0.0
    %v316 = vsel %vm306, %v311, 0.0
    %v317 = vsel %vm307, %v312, 0.0
    %v318 = vsel %vm308, %v313, 0.0
    %v319 = vsel %vm309, %v314, 0.0
    %v320 = vadd.f32 %v315, %v316
    %v321 = vadd.f32 %v320, %v317
    %v322 = vadd.f32 %v321, %v318
    %v323 = vadd.f32 %v322, %v319
    %v324 = vrot.slane %v323, 4
    %v325 = vadd.f32 %v323, %v324
    %v326 = vrot.slane %v325, 2
    %v327 = vadd.f32 %v325, %v326
    %v328 = vrot.slane %v327, 1
    %v329 = vadd.f32 %v327, %v328
    %vm330 = vcmask 0
    %331 = vst.msk [vmem:[#allocation5] sm:$0x1] %vm330, %v329
    // Predicated region
    $region22: #{model_forward.1} parent=1 // pred_check
      _
    $region23: #{model_forward.1} parent=1 // pred_check_branch
      %333 = sbr.rel (0) target = $region25
    $region24: #{model_forward.1} parent=1 // pred_region
      %335 = vsyncadd [#allocation4], 0
      %s337 = sshll.u32 [#allocation5], 4
      %s338 = int_to_ptr.vmem [resolvable:$true] %s337
      %s339 = sshll.u32 %s4, 4
      %s340 = int_to_ptr.hbm [resolvable:$true] %s339
      %342 = dma.vmem_to_hbm [thread:$0]  %s338, 16, %s340, [#allocation4]
    $region25: #{model_forward.1} parent=1 // pred_fallthru
      _
    // Predicated region
    $region26: #{model_forward.1} parent=1 // pred_check
      _
    $region27: #{model_forward.1} parent=1 // pred_check_branch
      %344 = sbr.rel (0) target = $region29
    $region28: #{model_forward.1} parent=1 // pred_region
      %346 = dma.done [#allocation4], 16
    $region29: #{model_forward.1} parent=1 // pred_fallthru
      _
    %347 = vsyncpa [#allocation3], 1
    %348 = vsyncpa [#allocation4], 1

</llo_original>
